<compile_context>
chip_gen: v6e
topology: v6e:2x2x1
jax: 0.10.0
libtpu: 0.0.40
codegen_flags: <defaults>
</compile_context>

<pallas_src>
import functools

import jax
import jax.numpy as jnp
from jax.experimental import pallas as pl
from jax.experimental.pallas import tpu as pltpu

# Above the scoped default (16/32 MiB), safely inside v7x's 64 MiB physical VMEM.
_VMEM_LIMIT_BYTES = 48 * 1024 * 1024
_LN_EPS = 1e-12


def _fit(dim, target):
    """Largest tile <= target that evenly divides dim (falls back to dim)."""
    t = min(dim, target)
    while dim % t:
        t -= 1
    return t


# ----------------------------------------------------------------------------
# Tiled dense (x @ w + b, optional activation) with K-accumulator
# ----------------------------------------------------------------------------

def _dense_kernel(x_ref, w_ref, b_ref, o_ref, acc_ref, *, activation):
    k = pl.program_id(2)

    @pl.when(k == 0)
    def _():
        acc_ref[...] = jnp.zeros_like(acc_ref)

    acc_ref[...] += jnp.dot(x_ref[...], w_ref[...],
                            preferred_element_type=jnp.float32)

    @pl.when(k == pl.num_programs(2) - 1)
    def _():
        y = acc_ref[...] + b_ref[...]
        if activation == "relu":
            y = jnp.maximum(y, 0.0)
        elif activation == "gelu":
            # TODO(synk): HF BERT uses exact erf-GELU; tanh approximation used here.
            y = jax.nn.gelu(y, approximate=True)
        o_ref[...] = y.astype(o_ref.dtype)


def dense(x, w, b, activation=None, out_dtype=None, *, tm=256, tn=256, tk=512):
    """act(x @ w + b). x:(M,K) bf16, w:(K,N) bf16, b:(N,) f32."""
    M, K = x.shape
    N = w.shape[1]
    tm, tn, tk = _fit(M, tm), _fit(N, tn), _fit(K, tk)
    out_dtype = out_dtype or x.dtype
    return pl.pallas_call(
        functools.partial(_dense_kernel, activation=activation),
        out_shape=jax.ShapeDtypeStruct((M, N), out_dtype),
        grid_spec=pltpu.PrefetchScalarGridSpec(
            num_scalar_prefetch=0,
            grid=(M // tm, N // tn, K // tk),
            in_specs=[
                pl.BlockSpec((tm, tk), lambda i, j, k: (i, k)),
                pl.BlockSpec((tk, tn), lambda i, j, k: (k, j)),
                pl.BlockSpec((1, tn), lambda i, j, k: (0, j)),
            ],
            out_specs=pl.BlockSpec((tm, tn), lambda i, j, k: (i, j)),
            scratch_shapes=[pltpu.VMEM((tm, tn), jnp.float32)],
        ),
        compiler_params=pltpu.CompilerParams(
            dimension_semantics=("parallel", "parallel", "arbitrary"),
            vmem_limit_bytes=_VMEM_LIMIT_BYTES),
    )(x, w, b.reshape(1, N))


# ----------------------------------------------------------------------------
# Dense fused with residual add + LayerNorm epilogue
# ----------------------------------------------------------------------------

def _dense_res_ln_kernel(x_ref, w_ref, b_ref, r_ref, g_ref, beta_ref,
                         o_ref, acc_ref, *, eps):
    k = pl.program_id(1)

    @pl.when(k == 0)
    def _():
        acc_ref[...] = jnp.zeros_like(acc_ref)

    acc_ref[...] += jnp.dot(x_ref[...], w_ref[...],
                            preferred_element_type=jnp.float32)

    @pl.when(k == pl.num_programs(1) - 1)
    def _():
        y = acc_ref[...] + b_ref[...] + r_ref[...].astype(jnp.float32)
        mu = jnp.mean(y, axis=-1, keepdims=True)
        yc = y - mu
        var = jnp.mean(yc * yc, axis=-1, keepdims=True)
        yn = yc * jax.lax.rsqrt(var + eps)
        o_ref[...] = (yn * g_ref[...] + beta_ref[...]).astype(o_ref.dtype)


def dense_res_layernorm(x, w, b, residual, gamma, beta, *,
                        eps=_LN_EPS, tm=256, tk=512):
    """LayerNorm(x @ w + b + residual); hidden dim kept as one lane-dense block."""
    M, K = x.shape
    N = w.shape[1]
    tm, tk = _fit(M, tm), _fit(K, tk)
    return pl.pallas_call(
        functools.partial(_dense_res_ln_kernel, eps=eps),
        out_shape=jax.ShapeDtypeStruct((M, N), residual.dtype),
        grid_spec=pltpu.PrefetchScalarGridSpec(
            num_scalar_prefetch=0,
            grid=(M // tm, K // tk),
            in_specs=[
                pl.BlockSpec((tm, tk), lambda i, k: (i, k)),
                pl.BlockSpec((tk, N), lambda i, k: (k, 0)),
                pl.BlockSpec((1, N), lambda i, k: (0, 0)),
                pl.BlockSpec((tm, N), lambda i, k: (i, 0)),
                pl.BlockSpec((1, N), lambda i, k: (0, 0)),
                pl.BlockSpec((1, N), lambda i, k: (0, 0)),
            ],
            out_specs=pl.BlockSpec((tm, N), lambda i, k: (i, 0)),
            scratch_shapes=[pltpu.VMEM((tm, N), jnp.float32)],
        ),
        compiler_params=pltpu.CompilerParams(
            dimension_semantics=("parallel", "arbitrary"),
            vmem_limit_bytes=_VMEM_LIMIT_BYTES),
    )(x, w, b.reshape(1, N), residual, gamma.reshape(1, N), beta.reshape(1, N))


# ----------------------------------------------------------------------------
# Standalone LayerNorm (no residual) for the embeddings
# ----------------------------------------------------------------------------

def _layernorm_kernel(x_ref, g_ref, b_ref, o_ref, *, eps):
    x = x_ref[...].astype(jnp.float32)
    mu = jnp.mean(x, axis=-1, keepdims=True)
    xc = x - mu
    var = jnp.mean(xc * xc, axis=-1, keepdims=True)
    y = xc * jax.lax.rsqrt(var + eps)
    o_ref[...] = (y * g_ref[...] + b_ref[...]).astype(o_ref.dtype)


def layernorm(x, gamma, beta, *, out_dtype, eps=_LN_EPS, tm=256):
    M, H = x.shape
    tm = _fit(M, tm)
    return pl.pallas_call(
        functools.partial(_layernorm_kernel, eps=eps),
        out_shape=jax.ShapeDtypeStruct((M, H), out_dtype),
        grid_spec=pltpu.PrefetchScalarGridSpec(
            num_scalar_prefetch=0,
            grid=(M // tm,),
            in_specs=[
                pl.BlockSpec((tm, H), lambda i: (i, 0)),
                pl.BlockSpec((1, H), lambda i: (0, 0)),
                pl.BlockSpec((1, H), lambda i: (0, 0)),
            ],
            out_specs=pl.BlockSpec((tm, H), lambda i: (i, 0)),
        ),
        compiler_params=pltpu.CompilerParams(
            dimension_semantics=("parallel",),
            vmem_limit_bytes=_VMEM_LIMIT_BYTES),
    )(x, gamma.reshape(1, H), beta.reshape(1, H))


# ----------------------------------------------------------------------------
# Multi-head attention, gridded over (batch x head-group)
# ----------------------------------------------------------------------------

def _attention_kernel(q_ref, k_ref, v_ref, m_ref, o_ref, *, scale):
    """softmax(scale*q k^T + mask) v for a group of heads of one batch row.
    q,k,v: (g, S, Dh) bf16; m: (1, 1, S) f32 additive mask shared across heads."""
    q = q_ref[...] * scale                          # fold 1/sqrt(Dh) into Q (O(S*Dh))
    s = jnp.einsum("gqd,gkd->gqk", q, k_ref[...],
                   preferred_element_type=jnp.float32)
    s = s + m_ref[...]
    s = s - jnp.max(s, axis=-1, keepdims=True)
    p = jnp.exp(s)
    denom = jnp.sum(p, axis=-1, keepdims=True)
    p = p * pl.reciprocal(denom, approx=True)       # EUP slot, ~free vs VPU divide
    out = jnp.einsum("gqk,gkd->gqd", p.astype(v_ref.dtype), v_ref[...],
                     preferred_element_type=jnp.float32)
    o_ref[...] = out.astype(o_ref.dtype)


def attention(q, k, v, add_mask, scale, *, heads, heads_per_block=None):
    """q,k,v: (B*heads, S, Dh); add_mask: (B, 1, S) additive, shared across heads."""
    BH, S, Dh = q.shape
    g = heads_per_block or heads
    assert heads % g == 0 and BH % g == 0
    # TODO(synk): for S >= ~1K, tile the kv axis flash-style (online softmax)
    # so the (g,S,S) scores never materialize in VMEM.
    qkv_spec = pl.BlockSpec((g, S, Dh), lambda i: (i, 0, 0))
    mask_spec = pl.BlockSpec((1, 1, S), lambda i: ((i * g) // heads, 0, 0))
    return pl.pallas_call(
        functools.partial(_attention_kernel, scale=scale),
        out_shape=jax.ShapeDtypeStruct((BH, S, Dh), q.dtype),
        grid_spec=pltpu.PrefetchScalarGridSpec(
            num_scalar_prefetch=0,
            grid=(BH // g,),
            in_specs=[qkv_spec, qkv_spec, qkv_spec, mask_spec],
            out_specs=pl.BlockSpec((g, S, Dh), lambda i: (i, 0, 0)),
        ),
        compiler_params=pltpu.CompilerParams(
            dimension_semantics=("parallel",),
            vmem_limit_bytes=_VMEM_LIMIT_BYTES),
    )(q, k, v, add_mask)


# ----------------------------------------------------------------------------
# Mini-BERT + LinearBlock parameters (deterministic synthetic init)
# ----------------------------------------------------------------------------

def init_params(key, *, vocab, max_pos, hidden, heads, ffn, layers, outdim):
    def nrm_bf16(k, shape, scale=0.02):
        return (scale * jax.random.normal(k, shape)).astype(jnp.bfloat16)

    def nrm_f32(k, shape, scale=0.02):
        return (scale * jax.random.normal(k, shape)).astype(jnp.float32)

    keys = jax.random.split(key, 8 + layers)
    p = {
        "word_emb": nrm_f32(keys[0], (vocab, hidden)),
        "pos_emb": nrm_f32(keys[1], (max_pos, hidden)),
        "type_emb": nrm_f32(keys[2], (2, hidden)),
        "emb_ln_g": jnp.ones((hidden,), jnp.float32),
        "emb_ln_b": jnp.zeros((hidden,), jnp.float32),
        "fc_w": nrm_bf16(keys[3], (hidden, outdim)),
        "fc_b": jnp.zeros((outdim,), jnp.float32),
        "layers": [],
    }
    for li in range(layers):
        lk = jax.random.split(keys[8 + li], 8)
        wq = nrm_bf16(lk[0], (hidden, hidden))
        wk = nrm_bf16(lk[1], (hidden, hidden))
        wv = nrm_bf16(lk[2], (hidden, hidden))
        p["layers"].append({
            # fused QKV projection: one (H, 3H) matmul instead of three
            "wqkv": jnp.concatenate([wq, wk, wv], axis=1),
            "bqkv": jnp.zeros((3 * hidden,), jnp.float32),
            "wo": nrm_bf16(lk[3], (hidden, hidden)),
            "bo": jnp.zeros((hidden,), jnp.float32),
            "ln1_g": jnp.ones((hidden,), jnp.float32),
            "ln1_b": jnp.zeros((hidden,), jnp.float32),
            "w1": nrm_bf16(lk[4], (hidden, ffn)),
            "b1": jnp.zeros((ffn,), jnp.float32),
            "w2": nrm_bf16(lk[5], (ffn, hidden)),
            "b2": jnp.zeros((hidden,), jnp.float32),
            "ln2_g": jnp.ones((hidden,), jnp.float32),
            "ln2_b": jnp.zeros((hidden,), jnp.float32),
        })
    return p


# ----------------------------------------------------------------------------
# Forward pass (gathers / head split are glue; hot paths are Pallas kernels)
# ----------------------------------------------------------------------------

def bert_embedding_forward(params, bert_ids, tmask, *, heads):
    B, S = bert_ids.shape
    H = params["word_emb"].shape[1]
    Dh = H // heads
    scale = 1.0 / (Dh ** 0.5)
    M = B * S

    # --- BERT embeddings (gather is glue); LayerNorm without a fake zero residual ---
    emb = (jnp.take(params["word_emb"], bert_ids, axis=0)
           + params["pos_emb"][:S][None, :, :]
           + params["type_emb"][0][None, None, :])          # token_type_ids == 0
    x = layernorm(emb.reshape(M, H), params["emb_ln_g"], params["emb_ln_b"],
                  out_dtype=jnp.bfloat16)

    # additive attention mask, one row per batch (broadcast across heads in-kernel)
    add_mask = ((1.0 - tmask.astype(jnp.float32)) * -1e9).reshape(B, 1, S)

    # --- transformer layers ---
    for lp in params["layers"]:
        # fused QKV projection -> (M, 3H) bf16
        qkv = dense(x, lp["wqkv"], lp["bqkv"])
        # head split: one XLA transpose for q, k, v together
        # TODO(synk): fold the head split into the attention BlockSpec to remove this transpose.
        qkv = (qkv.reshape(B, S, 3, heads, Dh)
                  .transpose(2, 0, 3, 1, 4)
                  .reshape(3, B * heads, S, Dh))
        q, k, v = qkv[0], qkv[1], qkv[2]

        ctx = attention(q, k, v, add_mask, scale, heads=heads)
        ctx = (ctx.reshape(B, heads, S, Dh)
                  .transpose(0, 2, 1, 3)
                  .reshape(M, H))

        # attention output projection fused with residual-add + LayerNorm
        x = dense_res_layernorm(ctx, lp["wo"], lp["bo"], x,
                                lp["ln1_g"], lp["ln1_b"])

        # FFN: up-projection + GELU, then down-projection fused with residual + LayerNorm
        h = dense(x, lp["w1"], lp["b1"], activation="gelu")
        x = dense_res_layernorm(h, lp["w2"], lp["b2"], x,
                                lp["ln2_g"], lp["ln2_b"])

    # --- LinearBlock: Linear + ReLU (+ Dropout = identity at eval) ---
    # TODO(synk): train-mode dropout not implemented (eval-mode identity).
    # TODO(synk): pad OUTDIM to a multiple of 128 for lane-dense stores at real sizes.
    out = dense(x, params["fc_w"], params["fc_b"], activation="relu",
                out_dtype=jnp.float32)
    outdim = params["fc_w"].shape[1]
    return out.reshape(B, S, outdim)


# ----------------------------------------------------------------------------
# Main
# ----------------------------------------------------------------------------

if __name__ == "__main__":
    B, S = 2, 8
    HIDDEN, HEADS, FFN, LAYERS = 32, 4, 64, 2
    VOCAB, MAX_POS = 100, 32
    OUTDIM = 16

    key = jax.random.PRNGKey(0)
    pkey, ikey, mkey = jax.random.split(key, 3)

    params = init_params(pkey, vocab=VOCAB, max_pos=MAX_POS, hidden=HIDDEN,
                         heads=HEADS, ffn=FFN, layers=LAYERS, outdim=OUTDIM)

    bert_ids = jax.random.randint(ikey, (B, S), 0, VOCAB, dtype=jnp.int32)
    # mask: first row fully valid, second row has 2 padding tokens
    tmask = jnp.ones((B, S), jnp.float32).at[1, -2:].set(0.0)

    out = bert_embedding_forward(params, bert_ids, tmask, heads=HEADS)
    jax.block_until_ready(out)
    assert out.shape == (B, S, OUTDIM)
    print("KERNEL_OK")
</pallas_src>

<mosaic_0001>
module attributes {stable_mosaic.version = 11 : i64} {
  func.func @_layernorm_kernel(%arg0: i32, %arg1: memref<16x32xf32, #tpu.memory_space<vmem>>, %arg2: memref<1x32xf32, #tpu.memory_space<vmem>>, %arg3: memref<1x32xf32, #tpu.memory_space<vmem>>, %arg4: memref<16x32xbf16, #tpu.memory_space<vmem>>) attributes {dimension_semantics = [#tpu.dimension_semantics<parallel>], iteration_bounds = array<i64: 1>, scalar_prefetch = 0 : i64, scratch_operands = 0 : i64, tpu.core_type = #tpu.core_type<tc>, window_params = [{transform_indices = @transform_0, window_bounds = array<i64: 16, 32>}, {pipeline_mode = #tpu.pipeline_mode<synchronous>, transform_indices = @transform_1, window_bounds = array<i64: 1, 32>}, {pipeline_mode = #tpu.pipeline_mode<synchronous>, transform_indices = @transform_2, window_bounds = array<i64: 1, 32>}, {transform_indices = @transform_3, window_bounds = array<i64: 16, 32>}]} {
    %c0 = arith.constant 0 : index
    %c0_0 = arith.constant 0 : index
    %0 = vector.load %arg1[%c0, %c0_0] : memref<16x32xf32, #tpu.memory_space<vmem>>, vector<16x32xf32>
    %cst = arith.constant dense<0.000000e+00> : vector<16xf32>
    %1 = vector.multi_reduction <add>, %0, %cst [1] : vector<16x32xf32> to vector<16xf32>
    %2 = vector.shape_cast %1 : vector<16xf32> to vector<16x1xf32>
    %cst_1 = arith.constant 3.200000e+01 : f32
    %3 = vector.broadcast %cst_1 : f32 to vector<16x1xf32>
    %4 = arith.divf %2, %3 : vector<16x1xf32>
    %5 = vector.broadcast %4 : vector<16x1xf32> to vector<16x32xf32>
    %6 = arith.subf %0, %5 : vector<16x32xf32>
    %7 = arith.mulf %6, %6 : vector<16x32xf32>
    %cst_2 = arith.constant dense<0.000000e+00> : vector<16xf32>
    %8 = vector.multi_reduction <add>, %7, %cst_2 [1] : vector<16x32xf32> to vector<16xf32>
    %9 = vector.shape_cast %8 : vector<16xf32> to vector<16x1xf32>
    %cst_3 = arith.constant 3.200000e+01 : f32
    %10 = vector.broadcast %cst_3 : f32 to vector<16x1xf32>
    %11 = arith.divf %9, %10 : vector<16x1xf32>
    %cst_4 = arith.constant 9.99999996E-13 : f32
    %12 = vector.broadcast %cst_4 : f32 to vector<16x1xf32>
    %13 = arith.addf %11, %12 : vector<16x1xf32>
    %14 = math.rsqrt %13 : vector<16x1xf32>
    %15 = vector.broadcast %14 : vector<16x1xf32> to vector<16x32xf32>
    %16 = arith.mulf %6, %15 : vector<16x32xf32>
    %c0_5 = arith.constant 0 : index
    %c0_6 = arith.constant 0 : index
    %17 = vector.load %arg2[%c0_5, %c0_6] : memref<1x32xf32, #tpu.memory_space<vmem>>, vector<1x32xf32>
    %18 = vector.broadcast %17 : vector<1x32xf32> to vector<16x32xf32>
    %19 = arith.mulf %16, %18 : vector<16x32xf32>
    %c0_7 = arith.constant 0 : index
    %c0_8 = arith.constant 0 : index
    %20 = vector.load %arg3[%c0_7, %c0_8] : memref<1x32xf32, #tpu.memory_space<vmem>>, vector<1x32xf32>
    %21 = vector.broadcast %20 : vector<1x32xf32> to vector<16x32xf32>
    %22 = arith.addf %19, %21 : vector<16x32xf32>
    %23 = arith.truncf %22 : vector<16x32xf32> to vector<16x32xbf16>
    %c0_9 = arith.constant 0 : index
    %c0_10 = arith.constant 0 : index
    %24 = vector.load %arg4[%c0_9, %c0_10] : memref<16x32xbf16, #tpu.memory_space<vmem>>, vector<16x32xbf16>
    tpu.vector_store %arg4[%c0_9, %c0_10], %23 {strides = array<i32>} : memref<16x32xbf16, #tpu.memory_space<vmem>>, vector<16x32xbf16>,
    return
  }
  func.func @transform_0(%arg0: i32) -> (i32, i32) {
    %c0_i32 = arith.constant 0 : i32
    %c0_i32_0 = arith.constant 0 : i32
    return %arg0, %c0_i32 : i32, i32
  }
  func.func @transform_1(%arg0: i32) -> (i32, i32) {
    %c0_i32 = arith.constant 0 : i32
    %c0_i32_0 = arith.constant 0 : i32
    %c0_i32_1 = arith.constant 0 : i32
    return %c0_i32, %c0_i32_0 : i32, i32
  }
  func.func @transform_2(%arg0: i32) -> (i32, i32) {
    %c0_i32 = arith.constant 0 : i32
    %c0_i32_0 = arith.constant 0 : i32
    %c0_i32_1 = arith.constant 0 : i32
    return %c0_i32, %c0_i32_0 : i32, i32
  }
  func.func @transform_3(%arg0: i32) -> (i32, i32) {
    %c0_i32 = arith.constant 0 : i32
    %c0_i32_0 = arith.constant 0 : i32
    return %arg0, %c0_i32 : i32, i32
  }
}

</mosaic_0001>

<llo_original>
// kernel: tpu_custom_call.1
$region0: #{tpu_custom_call.1}
  #allocation0 [shape = 'u32[]', space=smem, size = 0x4, offset = 0x4, fixed_abs, tag = 'smem constant byte address 0x4 - core index']
  #allocation1 [shape = 'u32[144,128]{1,0:T(1,128)}', space=vmem, size = 0x12000, scoped, tag = 'internal scratch']
  %s0 = inlined_call_operand.hbm [shape: f32[16,32], index: 0, kind: input, shape index: {}]
  %s1 = inlined_call_operand.vmem [shape: f32[1,32], index: 1, kind: input, shape index: {}]
  %s2 = inlined_call_operand.vmem [shape: f32[1,32], index: 2, kind: input, shape index: {}]
  %s3 = inlined_call_operand.hbm [shape: bf16[16,32], index: 3, kind: output, shape index: {}]
  %s4 = sld [smem:[#allocation0]]
  $region26: #{tpu_custom_call.1} parent=0
    _
  %s6 = ssub.s32 1, %s4
  %s7 = scalar_select 0, %s6, %s4
  $region1: #{tpu_custom_call.1} parent=0
    #allocation2 [shape = 'u8[8192]{0}', space=vmem, size = 0x2000, scoped, tag = 'input window, operand 0, single buffered']
    #allocation3 [shape = 's32[1]{0}', space=sflag, size = 0x4, scoped, tag = 'scoped memory for tpu_custom_call.1']
    #allocation4 [shape = 's32[1]{0}', space=sflag, size = 0x4, scoped, tag = 'scoped memory for tpu_custom_call.1']
    #allocation5 [shape = 'u8[4096]{0}', space=vmem, size = 0x1000, scoped, tag = 'output window, operand 0, single buffered']
    %8 = vsyncpa [#allocation3], 0
    %9 = vsyncpa [#allocation4], 0
    // Predicated region
    $region2: #{tpu_custom_call.1} parent=1 // pred_check
      _
    $region3: #{tpu_custom_call.1} parent=1 // pred_check_branch
      %11 = sbr.rel (0) target = $region5
    $region4: #{tpu_custom_call.1} parent=1 // pred_region
      %s13 = ssub.s32 256, 256
      %14 = vsyncadd [#allocation3], %s13
      %s15 = sshll.u32 [#allocation2], 4
      %s16 = int_to_ptr.vmem [resolvable:$true] %s15
      %21 = dma.hbm_to_vmem [thread:$0]  %s0, 256, %s16, [#allocation3], 128, 128, 8
    $region5: #{tpu_custom_call.1} parent=1 // pred_fallthru
      _
    // Predicated region
    $region6: #{tpu_custom_call.1} parent=1 // pred_check
      _
    $region7: #{tpu_custom_call.1} parent=1 // pred_check_branch
      %23 = sbr.rel (0) target = $region9
    $region8: #{tpu_custom_call.1} parent=1 // pred_region
      _
    $region9: #{tpu_custom_call.1} parent=1 // pred_fallthru
      _
    // Predicated region
    $region10: #{tpu_custom_call.1} parent=1 // pred_check
      _
    $region11: #{tpu_custom_call.1} parent=1 // pred_check_branch
      %25 = sbr.rel (0) target = $region13
    $region12: #{tpu_custom_call.1} parent=1 // pred_region
      _
    $region13: #{tpu_custom_call.1} parent=1 // pred_fallthru
      _
    // Predicated region
    $region14: #{tpu_custom_call.1} parent=1 // pred_check
      _
    $region15: #{tpu_custom_call.1} parent=1 // pred_check_branch
      %27 = sbr.rel (0) target = $region17
    $region16: #{tpu_custom_call.1} parent=1 // pred_region
      %28 = dma.done [#allocation3], 256
    $region17: #{tpu_custom_call.1} parent=1 // pred_fallthru
      _
    %v29 = vld [vmem:[#allocation2] sm:$0xff]
    %v30 = vld [vmem:[#allocation2 + $0x8] sm:$0xff]
    %vm31 = vcmask 261120
    %v32 = vsel %vm31, %v29, 0.0
    %33 = vadd.xlane.f32.xlu0 %v32
    %v34 = vpop.xlane.xlu0 %33
    %v35 = vsel %vm31, %v30, 0.0
    %36 = vadd.xlane.f32.xlu0 %v35
    %v37 = vpop.xlane.xlu0 %36
    %v38 = vrcp.pop 32.0
    %v39 = vmul.f32 %v34, %v38
    %v40 = vmul.f32 %v37, %v38
    %v41 = vsub.f32 %v29, %v39
    %v42 = vsub.f32 %v30, %v40
    %v43 = vmul.f32 %v41, %v41
    %v44 = vmul.f32 %v42, %v42
    %v45 = vsel %vm31, %v43, 0.0
    %46 = vadd.xlane.f32.xlu0 %v45
    %v47 = vpop.xlane.xlu0 %46
    %v48 = vsel %vm31, %v44, 0.0
    %49 = vadd.xlane.f32.xlu0 %v48
    %v50 = vpop.xlane.xlu0 %49
    %v51 = vmul.f32 %v47, %v38
    %v52 = vmul.f32 %v50, %v38
    %v53 = vadd.f32 %v51, 1e-12
    %v54 = vadd.f32 %v52, 1e-12
    %v55 = vrsqrt.pop %v53
    %v56 = vrsqrt.pop %v54
    %v57 = vmul.f32 %v41, %v55
    %v58 = vmul.f32 %v42, %v56
    %v59 = vld [vmem:[%s1] sm:$0x1]
    %v61 = vlaneseq
    %v62 = vshrl.u32 %v61, 7
    %v63 = vsub.s32 0, %v62
    %v64 = vrot.slane %v59, %v63
    %v66 = vmul.f32 %v57, %v64
    %v67 = vmul.f32 %v58, %v64
    %v68 = vld [vmem:[%s2] sm:$0x1]
    %v70 = vlaneseq
    %v71 = vshrl.u32 %v70, 7
    %v72 = vsub.s32 0, %v71
    %v73 = vrot.slane %v68, %v72
    %v75 = vadd.f32 %v66, %v73
    %v76 = vadd.f32 %v67, %v73
    %v77 = vpack.c.bf16 %v76, %v75
    %v79 = vunpack.c.l.b16 %v77
    %v80 = vunpack.c.h.b16 %v77
    %v81 = vpack.c.b16 %v79, %v79
    %v82 = vpack.c.b16 %v80, %v80
    %vm85 = vcmask 257024
    %86 = vst.msk [vmem:[#allocation5] sm:$0xf] %vm85, %v81
    %87 = vst.msk [vmem:[#allocation5 + $0x4] sm:$0xf] %vm85, %v82
    // Predicated region
    $region18: #{tpu_custom_call.1} parent=1 // pred_check
      _
    $region19: #{tpu_custom_call.1} parent=1 // pred_check_branch
      %89 = sbr.rel (0) target = $region21
    $region20: #{tpu_custom_call.1} parent=1 // pred_region
      %s91 = ssub.s32 128, 128
      %92 = vsyncadd [#allocation4], %s91
      %s93 = sshll.u32 [#allocation5], 4
      %s94 = int_to_ptr.vmem [resolvable:$true] %s93
      %99 = dma.vmem_to_hbm [thread:$0]  %s94, 128, %s3, [#allocation4], 64, 64, 4
    $region21: #{tpu_custom_call.1} parent=1 // pred_fallthru
      _
    // Predicated region
    $region22: #{tpu_custom_call.1} parent=1 // pred_check
      _
    $region23: #{tpu_custom_call.1} parent=1 // pred_check_branch
      %101 = sbr.rel (0) target = $region25
    $region24: #{tpu_custom_call.1} parent=1 // pred_region
      %102 = dma.done [#allocation4], 128
    $region25: #{tpu_custom_call.1} parent=1 // pred_fallthru
      _
    %103 = vsyncpa [#allocation3], 1
    %104 = vsyncpa [#allocation4], 1

</llo_original>
